<compile_context>
chip_gen: v5e
topology: v5e:2x2
jax: 0.10.0
libtpu: 0.0.40
codegen_flags: <defaults>
</compile_context>

<pallas_src>
from functools import partial

import jax
import jax.numpy as jnp
from jax.experimental import pallas as pl
from jax.experimental.pallas import tpu as pltpu


# ---------------------------------------------------------------------------
# Fused kernel: inner model (both CFG branches) + CFG combination, single shot.
#
# For each batch element b (statically unrolled, B=2):
#   h      = W1^T @ x_b                       (D, P)   shared by both branches
#   h_u    = relu(h + bias_u_b)                         (uncond)
#   h_c    = relu(h + bias_c_b)                         (cond)
#   h_mix  = h_u + (h_c - h_u) * cond_scale             (CFG folded before W2)
#   out_b  = W2^T @ h_mix + b2                (C, P)
# Layout: channels on sublanes, pixels P = H*W on lanes (P multiple of 128).
# ---------------------------------------------------------------------------
def _cfg_denoise_kernel(scale_ref, x_ref, bu_ref, bc_ref,
                        w1t_ref, w2t_ref, b2c_ref, o_ref):
    scale = scale_ref[0]                   # cond_scale scalar (SMEM)
    w1t = w1t_ref[...]                     # (D, C)
    w2t = w2t_ref[...]                     # (C, D)
    b2c = b2c_ref[...]                     # (C, 1)

    B = bu_ref.shape[0]
    C = w2t.shape[0]

    outs = []
    for b in range(B):                     # B=2, statically unrolled
        x_b = x_ref[b * C:(b + 1) * C, :]  # (C, P) static slice of the flat input
        # K=4 contraction; tiny for the MXU but kept as dot for clarity —
        # Mosaic may lower it as broadcast-FMAs on the VPU anyway.
        h = jnp.dot(w1t, x_b, preferred_element_type=jnp.float32)     # (D, P)
        h_u = jnp.maximum(h + bu_ref[b], 0.0)                          # uncond
        h_c = jnp.maximum(h + bc_ref[b], 0.0)                          # cond
        h_mix = h_u + (h_c - h_u) * scale                              # CFG mix
        y = jnp.dot(w2t, h_mix, preferred_element_type=jnp.float32) + b2c
        outs.append(y)                                                 # (C, P)

    # Single dense (B*C, P) = (8, P) store: full 8x128 vregs, no masking.
    o_ref[...] = jnp.concatenate(outs, axis=0).astype(o_ref.dtype)


def prepare_params(params):
    """One-time preprocessing (outside the sampling loop): transposed weights
    and flattened biases in the channels-first layout the kernel consumes."""
    D = params["w1"].shape[1]
    C = params["w2"].shape[1]
    return {
        "w1t": jnp.asarray(params["w1"].T, jnp.float32),        # (D, C)
        "w2t": jnp.asarray(params["w2"].T, jnp.float32),        # (C, D)
        "wc":  jnp.asarray(params["wc"], jnp.float32),          # (E, D)
        "b1":  jnp.asarray(params["b1"].reshape(D), jnp.float32),
        "s":   jnp.asarray(params["s"].reshape(D), jnp.float32),
        "bc":  jnp.asarray(params["bc"].reshape(D), jnp.float32),
        "b2c": jnp.asarray(params["b2"].reshape(C, 1), jnp.float32),
    }


@jax.jit
def cfg_denoiser_forward(x, sigma, clip_embed, prepped, cond_scale):
    """x: (B, C, H, W) NCHW; sigma: (B,); clip_embed: (B, E)."""
    B, C, H, W = x.shape
    P = H * W
    D = prepped["w1t"].shape[0]

    # Per-batch conditioning vectors (tiny O(B*D*E) work, fused by XLA):
    base = prepped["b1"][None, :] + sigma[:, None] * prepped["s"][None, :] \
        + prepped["bc"][None, :]                                   # (B, D)
    bias_u = base.reshape(B, D, 1)                                  # uncond
    bias_c = (base + clip_embed @ prepped["wc"]).reshape(B, D, 1)   # cond

    # NCHW -> flat (B*C, P): pure reshape, no HBM relayout; lane+sublane dense.
    x2 = x.reshape(B * C, P)
    scale = jnp.asarray(cond_scale, jnp.float32).reshape(1)

    flops = B * (4 * C * D * P) + B * 6 * D * P          # 2 matmuls + elementwise
    bytes_accessed = 4 * (2 * B * C * P + 2 * D * C + C + 2 * B * D + 1)

    out2 = pl.pallas_call(
        _cfg_denoise_kernel,
        out_shape=jax.ShapeDtypeStruct((B * C, P), jnp.float32),
        in_specs=[
            pl.BlockSpec(memory_space=pltpu.MemorySpace.SMEM),   # cond_scale (1,)
            pl.BlockSpec(memory_space=pltpu.MemorySpace.VMEM),   # x2      (B*C, P)
            pl.BlockSpec(memory_space=pltpu.MemorySpace.VMEM),   # bias_u  (B, D, 1)
            pl.BlockSpec(memory_space=pltpu.MemorySpace.VMEM),   # bias_c  (B, D, 1)
            pl.BlockSpec(memory_space=pltpu.MemorySpace.VMEM),   # w1t     (D, C)
            pl.BlockSpec(memory_space=pltpu.MemorySpace.VMEM),   # w2t     (C, D)
            pl.BlockSpec(memory_space=pltpu.MemorySpace.VMEM),   # b2c     (C, 1)
        ],
        out_specs=pl.BlockSpec(memory_space=pltpu.MemorySpace.VMEM),
        cost_estimate=pl.CostEstimate(
            flops=flops, transcendentals=0, bytes_accessed=bytes_accessed),
    )(scale, x2, bias_u, bias_c,
      prepped["w1t"], prepped["w2t"], prepped["b2c"])

    return out2.reshape(B, C, H, W)        # back to NCHW (pure reshape)


# ---------------------------------------------------------------------------
# Pure-JAX reference reproducing CFGDenoiser.forward exactly
# (torch.cat duplication, zeroed uncond clip embedding, chunk(2), CFG mix).
# ---------------------------------------------------------------------------
def _inner_ref(x_flat, sigma, clip, p):
    h = x_flat @ p["w1"] + p["b1"]
    h = h + sigma[:, None, None] * p["s"]
    h = h + (clip @ p["wc"] + p["bc"])[:, None, :]
    h = jnp.maximum(h, 0.0)
    return h @ p["w2"] + p["b2"]


def cfg_denoiser_ref(x, sigma, clip_embed, params, cond_scale):
    B, C, H, W = x.shape
    x_in = jnp.concatenate([x, x], axis=0)
    sigma_in = jnp.concatenate([sigma, sigma], axis=0)
    clip_in = jnp.concatenate([jnp.zeros_like(clip_embed), clip_embed], axis=0)
    x_flat = jnp.transpose(x_in, (0, 2, 3, 1)).reshape(2 * B, H * W, C)
    y = _inner_ref(x_flat, sigma_in, clip_in, params)
    uncond, cond = y[:B], y[B:]
    out = uncond + (cond - uncond) * cond_scale
    return out.reshape(B, H, W, C).transpose(0, 3, 1, 2)


if __name__ == "__main__":
    key = jax.random.PRNGKey(0)
    B, C, H, W = 2, 4, 16, 16        # NCHW, like the torch module
    E, D = 32, 32                    # clip-embedding dim, hidden dim
    ks = jax.random.split(key, 10)

    x = jax.random.normal(ks[0], (B, C, H, W), jnp.float32)
    sigma = jax.random.uniform(ks[1], (B,), jnp.float32, 0.1, 1.0)
    clip_embed = jax.random.normal(ks[2], (B, E), jnp.float32)

    # Deterministic synthetic inner-model parameters (torch-natural layout).
    params = {
        "w1": 0.2 * jax.random.normal(ks[3], (C, D), jnp.float32),
        "b1": 0.1 * jax.random.normal(ks[4], (1, D), jnp.float32),
        "s":  0.1 * jax.random.normal(ks[5], (1, D), jnp.float32),
        "wc": 0.2 * jax.random.normal(ks[6], (E, D), jnp.float32),
        "bc": 0.1 * jax.random.normal(ks[7], (1, D), jnp.float32),
        "w2": 0.2 * jax.random.normal(ks[8], (D, C), jnp.float32),
        "b2": 0.1 * jax.random.normal(ks[9], (1, C), jnp.float32),
    }
    cond_scale = 3.0

    prepped = prepare_params(params)    # once, outside the sampling loop
    out = cfg_denoiser_forward(x, sigma, clip_embed, prepped, cond_scale)
    out = jax.block_until_ready(out)

    ref = cfg_denoiser_ref(x, sigma, clip_embed, params, cond_scale)
    assert out.shape == (B, C, H, W)
    assert jnp.allclose(out, ref, atol=1e-4, rtol=1e-4), "mismatch vs reference"

    # TODO(synk): the original inner_model is an arbitrary nn.Module; here it
    # is a fixed synthetic conditioned per-pixel MLP.
    print("KERNEL_OK")
</pallas_src>

<mosaic_0001>
module attributes {stable_mosaic.version = 11 : i64} {
  func.func @_cfg_denoise_kernel(%arg0: memref<1xf32, #tpu.memory_space<smem>>, %arg1: memref<8x256xf32, #tpu.memory_space<vmem>>, %arg2: memref<2x32x1xf32, #tpu.memory_space<vmem>>, %arg3: memref<2x32x1xf32, #tpu.memory_space<vmem>>, %arg4: memref<32x4xf32, #tpu.memory_space<vmem>>, %arg5: memref<4x32xf32, #tpu.memory_space<vmem>>, %arg6: memref<4x1xf32, #tpu.memory_space<vmem>>, %arg7: memref<8x256xf32, #tpu.memory_space<vmem>>) attributes {dimension_semantics = [], scalar_prefetch = 0 : i64, scratch_operands = 0 : i64, tpu.core_type = #tpu.core_type<tc>} {
    %c0 = arith.constant 0 : index
    %0 = memref.load %arg0[%c0] : memref<1xf32, #tpu.memory_space<smem>>
    %c0_0 = arith.constant 0 : index
    %c0_1 = arith.constant 0 : index
    %1 = vector.load %arg4[%c0_0, %c0_1] : memref<32x4xf32, #tpu.memory_space<vmem>>, vector<32x4xf32>
    %c0_2 = arith.constant 0 : index
    %c0_3 = arith.constant 0 : index
    %2 = vector.load %arg5[%c0_2, %c0_3] : memref<4x32xf32, #tpu.memory_space<vmem>>, vector<4x32xf32>
    %c0_4 = arith.constant 0 : index
    %c0_5 = arith.constant 0 : index
    %3 = vector.load %arg6[%c0_4, %c0_5] : memref<4x1xf32, #tpu.memory_space<vmem>>, vector<4x1xf32>
    %c0_6 = arith.constant 0 : index
    %c0_7 = arith.constant 0 : index
    %4 = vector.load %arg1[%c0_6, %c0_7] : memref<8x256xf32, #tpu.memory_space<vmem>>, vector<4x256xf32>
    %cst = arith.constant dense<0.000000e+00> : vector<32x256xf32>
    %5 = tpu.matmul %1, %4, %cst {dimension_numbers = #tpu.dot_dimension_numbers<[1], [0], [0], [1], [0, 0, 1, 1], [], []>} : vector<32x4xf32>, vector<4x256xf32>, vector<32x256xf32> -> vector<32x256xf32>
    %c0_8 = arith.constant 0 : index
    %c0_9 = arith.constant 0 : index
    %c0_10 = arith.constant 0 : index
    %6 = vector.load %arg2[%c0_8, %c0_9, %c0_10] : memref<2x32x1xf32, #tpu.memory_space<vmem>>, vector<1x32x1xf32>
    %7 = vector.shape_cast %6 : vector<1x32x1xf32> to vector<32x1xf32>
    %8 = vector.broadcast %7 : vector<32x1xf32> to vector<32x256xf32>
    %9 = arith.addf %5, %8 : vector<32x256xf32>
    %cst_11 = arith.constant 0.000000e+00 : f32
    %10 = vector.broadcast %cst_11 : f32 to vector<32x256xf32>
    %11 = arith.maximumf %9, %10 : vector<32x256xf32>
    %c0_12 = arith.constant 0 : index
    %c0_13 = arith.constant 0 : index
    %c0_14 = arith.constant 0 : index
    %12 = vector.load %arg3[%c0_12, %c0_13, %c0_14] : memref<2x32x1xf32, #tpu.memory_space<vmem>>, vector<1x32x1xf32>
    %13 = vector.shape_cast %12 : vector<1x32x1xf32> to vector<32x1xf32>
    %14 = vector.broadcast %13 : vector<32x1xf32> to vector<32x256xf32>
    %15 = arith.addf %5, %14 : vector<32x256xf32>
    %cst_15 = arith.constant 0.000000e+00 : f32
    %16 = vector.broadcast %cst_15 : f32 to vector<32x256xf32>
    %17 = arith.maximumf %15, %16 : vector<32x256xf32>
    %18 = arith.subf %17, %11 : vector<32x256xf32>
    %19 = vector.broadcast %0 : f32 to vector<32x256xf32>
    %20 = arith.mulf %18, %19 : vector<32x256xf32>
    %21 = arith.addf %11, %20 : vector<32x256xf32>
    %cst_16 = arith.constant dense<0.000000e+00> : vector<4x256xf32>
    %22 = tpu.matmul %2, %21, %cst_16 {dimension_numbers = #tpu.dot_dimension_numbers<[1], [0], [0], [1], [0, 0, 1, 1], [], []>} : vector<4x32xf32>, vector<32x256xf32>, vector<4x256xf32> -> vector<4x256xf32>
    %23 = vector.broadcast %3 : vector<4x1xf32> to vector<4x256xf32>
    %24 = arith.addf %22, %23 : vector<4x256xf32>
    %c4 = arith.constant 4 : index
    %c0_17 = arith.constant 0 : index
    %25 = vector.load %arg1[%c4, %c0_17] : memref<8x256xf32, #tpu.memory_space<vmem>>, vector<4x256xf32>
    %cst_18 = arith.constant dense<0.000000e+00> : vector<32x256xf32>
    %26 = tpu.matmul %1, %25, %cst_18 {dimension_numbers = #tpu.dot_dimension_numbers<[1], [0], [0], [1], [0, 0, 1, 1], [], []>} : vector<32x4xf32>, vector<4x256xf32>, vector<32x256xf32> -> vector<32x256xf32>
    %c1 = arith.constant 1 : index
    %c0_19 = arith.constant 0 : index
    %c0_20 = arith.constant 0 : index
    %27 = vector.load %arg2[%c1, %c0_19, %c0_20] : memref<2x32x1xf32, #tpu.memory_space<vmem>>, vector<1x32x1xf32>
    %28 = vector.shape_cast %27 : vector<1x32x1xf32> to vector<32x1xf32>
    %29 = vector.broadcast %28 : vector<32x1xf32> to vector<32x256xf32>
    %30 = arith.addf %26, %29 : vector<32x256xf32>
    %cst_21 = arith.constant 0.000000e+00 : f32
    %31 = vector.broadcast %cst_21 : f32 to vector<32x256xf32>
    %32 = arith.maximumf %30, %31 : vector<32x256xf32>
    %c1_22 = arith.constant 1 : index
    %c0_23 = arith.constant 0 : index
    %c0_24 = arith.constant 0 : index
    %33 = vector.load %arg3[%c1_22, %c0_23, %c0_24] : memref<2x32x1xf32, #tpu.memory_space<vmem>>, vector<1x32x1xf32>
    %34 = vector.shape_cast %33 : vector<1x32x1xf32> to vector<32x1xf32>
    %35 = vector.broadcast %34 : vector<32x1xf32> to vector<32x256xf32>
    %36 = arith.addf %26, %35 : vector<32x256xf32>
    %cst_25 = arith.constant 0.000000e+00 : f32
    %37 = vector.broadcast %cst_25 : f32 to vector<32x256xf32>
    %38 = arith.maximumf %36, %37 : vector<32x256xf32>
    %39 = arith.subf %38, %32 : vector<32x256xf32>
    %40 = vector.broadcast %0 : f32 to vector<32x256xf32>
    %41 = arith.mulf %39, %40 : vector<32x256xf32>
    %42 = arith.addf %32, %41 : vector<32x256xf32>
    %cst_26 = arith.constant dense<0.000000e+00> : vector<4x256xf32>
    %43 = tpu.matmul %2, %42, %cst_26 {dimension_numbers = #tpu.dot_dimension_numbers<[1], [0], [0], [1], [0, 0, 1, 1], [], []>} : vector<4x32xf32>, vector<32x256xf32>, vector<4x256xf32> -> vector<4x256xf32>
    %44 = vector.broadcast %3 : vector<4x1xf32> to vector<4x256xf32>
    %45 = arith.addf %43, %44 : vector<4x256xf32>
    %46 = tpu.concatenate %24, %45 in 0 : vector<4x256xf32>, vector<4x256xf32> -> vector<8x256xf32>
    %c0_27 = arith.constant 0 : index
    %c0_28 = arith.constant 0 : index
    %47 = vector.load %arg7[%c0_27, %c0_28] : memref<8x256xf32, #tpu.memory_space<vmem>>, vector<8x256xf32>
    tpu.vector_store %arg7[%c0_27, %c0_28], %46 {strides = array<i32>} : memref<8x256xf32, #tpu.memory_space<vmem>>, vector<8x256xf32>,
    return
  }
}

</mosaic_0001>

<llo_original>
// kernel: cfg_denoiser_forward.1
$region0: #{cfg_denoiser_forward.1}
  #allocation0 [shape = 'u32[]', space=smem, size = 0x4, offset = 0x4, fixed_abs, tag = 'smem constant byte address 0x4 - core index']
  #allocation1 [shape = 'u32[72,128]{1,0:T(1,128)}', space=vmem, size = 0x9000, scoped, tag = 'internal scratch']
  #allocation2 [shape = 'f32[1]{0:T(128)S(6)}', space=smem, size = 0x200, scoped, tag = 'scoped memory for cfg_denoiser_forward.1']
  %s0 = inlined_call_operand.<no memory space> [shape: f32[1], index: 0, kind: input, shape index: {}]
  %s1 = inlined_call_operand.vmem [shape: f32[8,256], index: 1, kind: input, shape index: {}]
  %s2 = inlined_call_operand.vmem [shape: f32[2,32,1], index: 2, kind: input, shape index: {}]
  %s3 = inlined_call_operand.vmem [shape: f32[2,32,1], index: 3, kind: input, shape index: {}]
  %s4 = inlined_call_operand.vmem [shape: f32[32,4], index: 4, kind: input, shape index: {}]
  %s5 = inlined_call_operand.vmem [shape: f32[4,32], index: 5, kind: input, shape index: {}]
  %s6 = inlined_call_operand.vmem [shape: f32[4,1], index: 6, kind: input, shape index: {}]
  %s7 = inlined_call_operand.vmem [shape: f32[8,256], index: 7, kind: output, shape index: {}]
  %s8 = sld [smem:[#allocation0]]
  $region38: #{cfg_denoiser_forward.1} parent=0
    _
  %s10 = ssub.s32 1, %s8
  %s11 = scalar_select 0, %s10, %s8
  %12 = sst [smem:[#allocation2]] %s0
  // Predicated region
  $region2: #{cfg_denoiser_forward.1} parent=0 // pred_check
    _
  $region3: #{cfg_denoiser_forward.1} parent=0 // pred_check_branch
    %14 = sbr.rel (0) target = $region5
  $region4: #{cfg_denoiser_forward.1} parent=0 // pred_region
    _
  $region5: #{cfg_denoiser_forward.1} parent=0 // pred_fallthru
    _
  // Predicated region
  $region6: #{cfg_denoiser_forward.1} parent=0 // pred_check
    _
  $region7: #{cfg_denoiser_forward.1} parent=0 // pred_check_branch
    %16 = sbr.rel (0) target = $region9
  $region8: #{cfg_denoiser_forward.1} parent=0 // pred_region
    _
  $region9: #{cfg_denoiser_forward.1} parent=0 // pred_fallthru
    _
  // Predicated region
  $region10: #{cfg_denoiser_forward.1} parent=0 // pred_check
    _
  $region11: #{cfg_denoiser_forward.1} parent=0 // pred_check_branch
    %18 = sbr.rel (0) target = $region13
  $region12: #{cfg_denoiser_forward.1} parent=0 // pred_region
    _
  $region13: #{cfg_denoiser_forward.1} parent=0 // pred_fallthru
    _
  // Predicated region
  $region14: #{cfg_denoiser_forward.1} parent=0 // pred_check
    _
  $region15: #{cfg_denoiser_forward.1} parent=0 // pred_check_branch
    %20 = sbr.rel (0) target = $region17
  $region16: #{cfg_denoiser_forward.1} parent=0 // pred_region
    _
  $region17: #{cfg_denoiser_forward.1} parent=0 // pred_fallthru
    _
  // Predicated region
  $region18: #{cfg_denoiser_forward.1} parent=0 // pred_check
    _
  $region19: #{cfg_denoiser_forward.1} parent=0 // pred_check_branch
    %22 = sbr.rel (0) target = $region21
  $region20: #{cfg_denoiser_forward.1} parent=0 // pred_region
    _
  $region21: #{cfg_denoiser_forward.1} parent=0 // pred_fallthru
    _
  // Predicated region
  $region22: #{cfg_denoiser_forward.1} parent=0 // pred_check
    _
  $region23: #{cfg_denoiser_forward.1} parent=0 // pred_check_branch
    %24 = sbr.rel (0) target = $region25
  $region24: #{cfg_denoiser_forward.1} parent=0 // pred_region
    _
  $region25: #{cfg_denoiser_forward.1} parent=0 // pred_fallthru
    _
  // Predicated region
  $region26: #{cfg_denoiser_forward.1} parent=0 // pred_check
    _
  $region27: #{cfg_denoiser_forward.1} parent=0 // pred_check_branch
    %26 = sbr.rel (0) target = $region29
  $region28: #{cfg_denoiser_forward.1} parent=0 // pred_region
    _
  $region29: #{cfg_denoiser_forward.1} parent=0 // pred_fallthru
    _
  %s27 = sld [smem:[#allocation2]]
  %v28 = vld [vmem:[%s4] sm:$0xff]
  %v29 = vld [vmem:[%s4 + $0x8] sm:$0xff]
  %v30 = vld [vmem:[%s4 + $0x10] sm:$0xff]
  %v31 = vld [vmem:[%s4 + $0x18] sm:$0xff]
  %v32 = vld [vmem:[%s5] sm:$0xf]
  %v33 = vld [vmem:[%s6] sm:$0xf]
  %v34 = vld [vmem:[%s1] sm:$0xf]
  %v35 = vld [vmem:[%s1 + $0x8] sm:$0xf]
  %vm36 = vcmask 31744
  %v38 = vsel %vm36, %v28, 0
  %v41 = vsel %vm36, %v29, 0
  %v44 = vsel %vm36, %v30, 0
  %v47 = vsel %vm36, %v31, 0
  %vm49 = vcmask 1043456
  %v51 = vsel %vm49, %v34, 0
  %v54 = vsel %vm49, %v35, 0
  %56 = vmatpush.msra.mxu0 0.0
  %57 = vmatpush.msra.mxu0 0.0
  %58 = vmatpush.msra.mxu0 0.0
  %59 = vmatpush.msra.mxu0 0.0
  %60 = vmatpush.msra.mxu0 0.0
  %61 = vmatpush.msra.mxu0 0.0
  %62 = vmatpush.msra.mxu0 0.0
  %63 = vmatpush.msra.mxu0 0.0
  %64 = vmatpush.msra.mxu0 0.0
  %65 = vmatpush.msra.mxu0 0.0
  %66 = vmatpush.msra.mxu0 0.0
  %67 = vmatpush.msra.mxu0 0.0
  %68 = vmatpush.msra.mxu0 0.0
  %69 = vmatpush.msra.mxu0 0.0
  %70 = vmatpush.msra.mxu0 0.0
  %71 = vmatpush.msra.mxu0 %v51
  %72 = vmatmul.f32.gmra.mxu0 %v38
  %v73 = vpop.f32.mrf.mxu0
  %v74 = vadd.f32 0.0, %v73
  %75 = vmatmul.f32.gmra.mxu0 %v41
  %v76 = vpop.f32.mrf.mxu0
  %v77 = vadd.f32 0.0, %v76
  %78 = vmatmul.f32.gmra.mxu0 %v44
  %v79 = vpop.f32.mrf.mxu0
  %v80 = vadd.f32 0.0, %v79
  %81 = vmatmul.f32.gmra.mxu0 %v47
  %v82 = vpop.f32.mrf.mxu0
  %v83 = vadd.f32 0.0, %v82
  %84 = vdwg.mxu0
  %85 = vmatpush.msra.mxu0 0.0
  %86 = vmatpush.msra.mxu0 0.0
  %87 = vmatpush.msra.mxu0 0.0
  %88 = vmatpush.msra.mxu0 0.0
  %89 = vmatpush.msra.mxu0 0.0
  %90 = vmatpush.msra.mxu0 0.0
  %91 = vmatpush.msra.mxu0 0.0
  %92 = vmatpush.msra.mxu0 0.0
  %93 = vmatpush.msra.mxu0 0.0
  %94 = vmatpush.msra.mxu0 0.0
  %95 = vmatpush.msra.mxu0 0.0
  %96 = vmatpush.msra.mxu0 0.0
  %97 = vmatpush.msra.mxu0 0.0
  %98 = vmatpush.msra.mxu0 0.0
  %99 = vmatpush.msra.mxu0 0.0
  %100 = vmatpush.msra.mxu0 %v54
  %101 = vmatmul.f32.gmra.mxu0 %v38
  %v102 = vpop.f32.mrf.mxu0
  %v103 = vadd.f32 0.0, %v102
  %104 = vmatmul.f32.gmra.mxu0 %v41
  %v105 = vpop.f32.mrf.mxu0
  %v106 = vadd.f32 0.0, %v105
  %107 = vmatmul.f32.gmra.mxu0 %v44
  %v108 = vpop.f32.mrf.mxu0
  %v109 = vadd.f32 0.0, %v108
  %110 = vmatmul.f32.gmra.mxu0 %v47
  %v111 = vpop.f32.mrf.mxu0
  %v112 = vadd.f32 0.0, %v111
  %113 = vdwg.mxu0
  %v114 = vld [vmem:[%s2] sm:$0xff]
  %v115 = vld [vmem:[%s2 + $0x8] sm:$0xff]
  %v116 = vld [vmem:[%s2 + $0x10] sm:$0xff]
  %v117 = vld [vmem:[%s2 + $0x18] sm:$0xff]
  %119 = vset.pattern.permute.xlu0 0
  %120 = vperm.xlu0 %119, %v114
  %v121 = vpop.permute.xlu0 %120
  %124 = vset.pattern.permute.xlu0 0
  %125 = vperm.xlu0 %124, %v115
  %v126 = vpop.permute.xlu0 %125
  %129 = vset.pattern.permute.xlu0 0
  %130 = vperm.xlu0 %129, %v116
  %v131 = vpop.permute.xlu0 %130
  %134 = vset.pattern.permute.xlu0 0
  %135 = vperm.xlu0 %134, %v117
  %v136 = vpop.permute.xlu0 %135
  %v138 = vadd.f32 %v74, %v121
  %v139 = vadd.f32 %v103, %v121
  %v140 = vadd.f32 %v77, %v126
  %v141 = vadd.f32 %v106, %v126
  %v142 = vadd.f32 %v80, %v131
  %v143 = vadd.f32 %v109, %v131
  %v144 = vadd.f32 %v83, %v136
  %v145 = vadd.f32 %v112, %v136
  %v146 = vmax.f32 %v138, 0.0
  %v147 = vmax.f32 %v139, 0.0
  %v148 = vmax.f32 %v140, 0.0
  %v149 = vmax.f32 %v141, 0.0
  %v150 = vmax.f32 %v142, 0.0
  %v151 = vmax.f32 %v143, 0.0
  %v152 = vmax.f32 %v144, 0.0
  %v153 = vmax.f32 %v145, 0.0
  %v154 = vld [vmem:[%s3] sm:$0xff]
  %v155 = vld [vmem:[%s3 + $0x8] sm:$0xff]
  %v156 = vld [vmem:[%s3 + $0x10] sm:$0xff]
  %v157 = vld [vmem:[%s3 + $0x18] sm:$0xff]
  %159 = vset.pattern.permute.xlu0 0
  %160 = vperm.xlu0 %159, %v154
  %v161 = vpop.permute.xlu0 %160
  %164 = vset.pattern.permute.xlu0 0
  %165 = vperm.xlu0 %164, %v155
  %v166 = vpop.permute.xlu0 %165
  %169 = vset.pattern.permute.xlu0 0
  %170 = vperm.xlu0 %169, %v156
  %v171 = vpop.permute.xlu0 %170
  %174 = vset.pattern.permute.xlu0 0
  %175 = vperm.xlu0 %174, %v157
  %v176 = vpop.permute.xlu0 %175
  %v178 = vadd.f32 %v74, %v161
  %v179 = vadd.f32 %v103, %v161
  %v180 = vadd.f32 %v77, %v166
  %v181 = vadd.f32 %v106, %v166
  %v182 = vadd.f32 %v80, %v171
  %v183 = vadd.f32 %v109, %v171
  %v184 = vadd.f32 %v83, %v176
  %v185 = vadd.f32 %v112, %v176
  %v186 = vmax.f32 %v178, 0.0
  %v187 = vmax.f32 %v179, 0.0
  %v188 = vmax.f32 %v180, 0.0
  %v189 = vmax.f32 %v181, 0.0
  %v190 = vmax.f32 %v182, 0.0
  %v191 = vmax.f32 %v183, 0.0
  %v192 = vmax.f32 %v184, 0.0
  %v193 = vmax.f32 %v185, 0.0
  %v194 = vsub.f32 %v186, %v146
  %v195 = vsub.f32 %v187, %v147
  %v196 = vsub.f32 %v188, %v148
  %v197 = vsub.f32 %v189, %v149
  %v198 = vsub.f32 %v190, %v150
  %v199 = vsub.f32 %v191, %v151
  %v200 = vsub.f32 %v192, %v152
  %v201 = vsub.f32 %v193, %v153
  %v202 = vstv %s27
  %v203 = vmul.f32 %v194, %v202
  %v204 = vmul.f32 %v195, %v202
  %v205 = vmul.f32 %v196, %v202
  %v206 = vmul.f32 %v197, %v202
  %v207 = vmul.f32 %v198, %v202
  %v208 = vmul.f32 %v199, %v202
  %v209 = vmul.f32 %v200, %v202
  %v210 = vmul.f32 %v201, %v202
  %v211 = vadd.f32 %v146, %v203
  %v212 = vadd.f32 %v147, %v204
  %v213 = vadd.f32 %v148, %v205
  %v214 = vadd.f32 %v149, %v206
  %v215 = vadd.f32 %v150, %v207
  %v216 = vadd.f32 %v151, %v208
  %v217 = vadd.f32 %v152, %v209
  %v218 = vadd.f32 %v153, %v210
  %220 = vset.pattern.permute.xlu0 0
  %221 = vperm.xlu0 %220, %v33
  %v222 = vpop.permute.xlu0 %221
  %vm224 = vcmask 261120
  %v226 = vsel %vm224, %v32, 0
  %228 = vmatpush.msra.mxu0 0.0
  %229 = vmatpush.msra.mxu0 0.0
  %230 = vmatpush.msra.mxu0 0.0
  %231 = vmatpush.msra.mxu0 0.0
  %232 = vmatpush.msra.mxu0 0.0
  %233 = vmatpush.msra.mxu0 0.0
  %234 = vmatpush.msra.mxu0 0.0
  %235 = vmatpush.msra.mxu0 0.0
  %236 = vmatpush.msra.mxu0 0.0
  %237 = vmatpush.msra.mxu0 0.0
  %238 = vmatpush.msra.mxu0 0.0
  %239 = vmatpush.msra.mxu0 0.0
  %240 = vmatpush.msra.mxu0 %v217
  %241 = vmatpush.msra.mxu0 %v215
  %242 = vmatpush.msra.mxu0 %v213
  %243 = vmatpush.msra.mxu0 %v211
  %244 = vmatmul.f32.gmra.mxu0 %v226
  %v245 = vpop.f32.mrf.mxu0
  %v246 = vadd.f32 %v222, %v245
  %247 = vdwg.mxu0
  %248 = vmatpush.msra.mxu0 0.0
  %249 = vmatpush.msra.mxu0 0.0
  %250 = vmatpush.msra.mxu0 0.0
  %251 = vmatpush.msra.mxu0 0.0
  %252 = vmatpush.msra.mxu0 0.0
  %253 = vmatpush.msra.mxu0 0.0
  %254 = vmatpush.msra.mxu0 0.0
  %255 = vmatpush.msra.mxu0 0.0
  %256 = vmatpush.msra.mxu0 0.0
  %257 = vmatpush.msra.mxu0 0.0
  %258 = vmatpush.msra.mxu0 0.0
  %259 = vmatpush.msra.mxu0 0.0
  %260 = vmatpush.msra.mxu0 %v218
  %261 = vmatpush.msra.mxu0 %v216
  %262 = vmatpush.msra.mxu0 %v214
  %263 = vmatpush.msra.mxu0 %v212
  %264 = vmatmul.f32.gmra.mxu0 %v226
  %v265 = vpop.f32.mrf.mxu0
  %v266 = vadd.f32 %v222, %v265
  %267 = vdwg.mxu0
  %v268 = vld [vmem:[%s1] sm:$0xf0]
  %v269 = vld [vmem:[%s1 + $0x8] sm:$0xf0]
  %v272 = vrot.slane %v268, 4
  %v273 = vrot.slane %v269, 4
  %v274 = vsel %vm49, %v272, 0
  %v276 = vsel %vm49, %v273, 0
  %278 = vmatpush.msra.mxu0 0.0
  %279 = vmatpush.msra.mxu0 0.0
  %280 = vmatpush.msra.mxu0 0.0
  %281 = vmatpush.msra.mxu0 0.0
  %282 = vmatpush.msra.mxu0 0.0
  %283 = vmatpush.msra.mxu0 0.0
  %284 = vmatpush.msra.mxu0 0.0
  %285 = vmatpush.msra.mxu0 0.0
  %286 = vmatpush.msra.mxu0 0.0
  %287 = vmatpush.msra.mxu0 0.0
  %288 = vmatpush.msra.mxu0 0.0
  %289 = vmatpush.msra.mxu0 0.0
  %290 = vmatpush.msra.mxu0 0.0
  %291 = vmatpush.msra.mxu0 0.0
  %292 = vmatpush.msra.mxu0 0.0
  %293 = vmatpush.msra.mxu0 %v274
  %294 = vmatmul.f32.gmra.mxu0 %v38
  %v295 = vpop.f32.mrf.mxu0
  %v296 = vadd.f32 0.0, %v295
  %297 = vmatmul.f32.gmra.mxu0 %v41
  %v298 = vpop.f32.mrf.mxu0
  %v299 = vadd.f32 0.0, %v298
  %300 = vmatmul.f32.gmra.mxu0 %v44
  %v301 = vpop.f32.mrf.mxu0
  %v302 = vadd.f32 0.0, %v301
  %303 = vmatmul.f32.gmra.mxu0 %v47
  %v304 = vpop.f32.mrf.mxu0
  %v305 = vadd.f32 0.0, %v304
  %306 = vdwg.mxu0
  %307 = vmatpush.msra.mxu0 0.0
  %308 = vmatpush.msra.mxu0 0.0
  %309 = vmatpush.msra.mxu0 0.0
  %310 = vmatpush.msra.mxu0 0.0
  %311 = vmatpush.msra.mxu0 0.0
  %312 = vmatpush.msra.mxu0 0.0
  %313 = vmatpush.msra.mxu0 0.0
  %314 = vmatpush.msra.mxu0 0.0
  %315 = vmatpush.msra.mxu0 0.0
  %316 = vmatpush.msra.mxu0 0.0
  %317 = vmatpush.msra.mxu0 0.0
  %318 = vmatpush.msra.mxu0 0.0
  %319 = vmatpush.msra.mxu0 0.0
  %320 = vmatpush.msra.mxu0 0.0
  %321 = vmatpush.msra.mxu0 0.0
  %322 = vmatpush.msra.mxu0 %v276
  %323 = vmatmul.f32.gmra.mxu0 %v38
  %v324 = vpop.f32.mrf.mxu0
  %v325 = vadd.f32 0.0, %v324
  %326 = vmatmul.f32.gmra.mxu0 %v41
  %v327 = vpop.f32.mrf.mxu0
  %v328 = vadd.f32 0.0, %v327
  %329 = vmatmul.f32.gmra.mxu0 %v44
  %v330 = vpop.f32.mrf.mxu0
  %v331 = vadd.f32 0.0, %v330
  %332 = vmatmul.f32.gmra.mxu0 %v47
  %v333 = vpop.f32.mrf.mxu0
  %v334 = vadd.f32 0.0, %v333
  %335 = vdwg.mxu0
  %s336 = scalar_lea.vmem %s2, 32
  %v337 = vld [vmem:[%s336] sm:$0xff]
  %v338 = vld [vmem:[%s336 + $0x8] sm:$0xff]
  %v339 = vld [vmem:[%s336 + $0x10] sm:$0xff]
  %v340 = vld [vmem:[%s336 + $0x18] sm:$0xff]
  %342 = vset.pattern.permute.xlu0 0
  %343 = vperm.xlu0 %342, %v337
  %v344 = vpop.permute.xlu0 %343
  %347 = vset.pattern.permute.xlu0 0
  %348 = vperm.xlu0 %347, %v338
  %v349 = vpop.permute.xlu0 %348
  %352 = vset.pattern.permute.xlu0 0
  %353 = vperm.xlu0 %352, %v339
  %v354 = vpop.permute.xlu0 %353
  %357 = vset.pattern.permute.xlu0 0
  %358 = vperm.xlu0 %357, %v340
  %v359 = vpop.permute.xlu0 %358
  %v361 = vadd.f32 %v296, %v344
  %v362 = vadd.f32 %v325, %v344
  %v363 = vadd.f32 %v299, %v349
  %v364 = vadd.f32 %v328, %v349
  %v365 = vadd.f32 %v302, %v354
  %v366 = vadd.f32 %v331, %v354
  %v367 = vadd.f32 %v305, %v359
  %v368 = vadd.f32 %v334, %v359
  %v369 = vmax.f32 %v361, 0.0
  %v370 = vmax.f32 %v362, 0.0
  %v371 = vmax.f32 %v363, 0.0
  %v372 = vmax.f32 %v364, 0.0
  %v373 = vmax.f32 %v365, 0.0
  %v374 = vmax.f32 %v366, 0.0
  %v375 = vmax.f32 %v367, 0.0
  %v376 = vmax.f32 %v368, 0.0
  %s377 = scalar_lea.vmem %s3, 32
  %v378 = vld [vmem:[%s377] sm:$0xff]
  %v379 = vld [vmem:[%s377 + $0x8] sm:$0xff]
  %v380 = vld [vmem:[%s377 + $0x10] sm:$0xff]
  %v381 = vld [vmem:[%s377 + $0x18] sm:$0xff]
  %383 = vset.pattern.permute.xlu0 0
  %384 = vperm.xlu0 %383, %v378
  %v385 = vpop.permute.xlu0 %384
  %388 = vset.pattern.permute.xlu0 0
  %389 = vperm.xlu0 %388, %v379
  %v390 = vpop.permute.xlu0 %389
  %393 = vset.pattern.permute.xlu0 0
  %394 = vperm.xlu0 %393, %v380
  %v395 = vpop.permute.xlu0 %394
  %398 = vset.pattern.permute.xlu0 0
  %399 = vperm.xlu0 %398, %v381
  %v400 = vpop.permute.xlu0 %399
  %v402 = vadd.f32 %v296, %v385
  %v403 = vadd.f32 %v325, %v385
  %v404 = vadd.f32 %v299, %v390
  %v405 = vadd.f32 %v328, %v390
  %v406 = vadd.f32 %v302, %v395
  %v407 = vadd.f32 %v331, %v395
  %v408 = vadd.f32 %v305, %v400
  %v409 = vadd.f32 %v334, %v400
  %v410 = vmax.f32 %v402, 0.0
  %v411 = vmax.f32 %v403, 0.0
  %v412 = vmax.f32 %v404, 0.0
  %v413 = vmax.f32 %v405, 0.0
  %v414 = vmax.f32 %v406, 0.0
  %v415 = vmax.f32 %v407, 0.0
  %v416 = vmax.f32 %v408, 0.0
  %v417 = vmax.f32 %v409, 0.0
  %v418 = vsub.f32 %v410, %v369
  %v419 = vsub.f32 %v411, %v370
  %v420 = vsub.f32 %v412, %v371
  %v421 = vsub.f32 %v413, %v372
  %v422 = vsub.f32 %v414, %v373
  %v423 = vsub.f32 %v415, %v374
  %v424 = vsub.f32 %v416, %v375
  %v425 = vsub.f32 %v417, %v376
  %v426 = vmul.f32 %v418, %v202
  %v427 = vmul.f32 %v419, %v202
  %v428 = vmul.f32 %v420, %v202
  %v429 = vmul.f32 %v421, %v202
  %v430 = vmul.f32 %v422, %v202
  %v431 = vmul.f32 %v423, %v202
  %v432 = vmul.f32 %v424, %v202
  %v433 = vmul.f32 %v425, %v202
  %v434 = vadd.f32 %v369, %v426
  %v435 = vadd.f32 %v370, %v427
  %v436 = vadd.f32 %v371, %v428
  %v437 = vadd.f32 %v372, %v429
  %v438 = vadd.f32 %v373, %v430
  %v439 = vadd.f32 %v374, %v431
  %v440 = vadd.f32 %v375, %v432
  %v441 = vadd.f32 %v376, %v433
  %442 = vmatpush.msra.mxu0 0.0
  %443 = vmatpush.msra.mxu0 0.0
  %444 = vmatpush.msra.mxu0 0.0
  %445 = vmatpush.msra.mxu0 0.0
  %446 = vmatpush.msra.mxu0 0.0
  %447 = vmatpush.msra.mxu0 0.0
  %448 = vmatpush.msra.mxu0 0.0
  %449 = vmatpush.msra.mxu0 0.0
  %450 = vmatpush.msra.mxu0 0.0
  %451 = vmatpush.msra.mxu0 0.0
  %452 = vmatpush.msra.mxu0 0.0
  %453 = vmatpush.msra.mxu0 0.0
  %454 = vmatpush.msra.mxu0 %v440
  %455 = vmatpush.msra.mxu0 %v438
  %456 = vmatpush.msra.mxu0 %v436
  %457 = vmatpush.msra.mxu0 %v434
  %458 = vmatmul.f32.gmra.mxu0 %v226
  %v459 = vpop.f32.mrf.mxu0
  %v460 = vadd.f32 %v222, %v459
  %461 = vdwg.mxu0
  %462 = vmatpush.msra.mxu0 0.0
  %463 = vmatpush.msra.mxu0 0.0
  %464 = vmatpush.msra.mxu0 0.0
  %465 = vmatpush.msra.mxu0 0.0
  %466 = vmatpush.msra.mxu0 0.0
  %467 = vmatpush.msra.mxu0 0.0
  %468 = vmatpush.msra.mxu0 0.0
  %469 = vmatpush.msra.mxu0 0.0
  %470 = vmatpush.msra.mxu0 0.0
  %471 = vmatpush.msra.mxu0 0.0
  %472 = vmatpush.msra.mxu0 0.0
  %473 = vmatpush.msra.mxu0 0.0
  %474 = vmatpush.msra.mxu0 %v441
  %475 = vmatpush.msra.mxu0 %v439
  %476 = vmatpush.msra.mxu0 %v437
  %477 = vmatpush.msra.mxu0 %v435
  %478 = vmatmul.f32.gmra.mxu0 %v226
  %v479 = vpop.f32.mrf.mxu0
  %v480 = vadd.f32 %v222, %v479
  %481 = vdwg.mxu0
  %v484 = vrot.slane %v460, 4
  %v485 = vrot.slane %v480, 4
  %v488 = vsel %vm49, %v246, %v484
  %v489 = vsel %vm49, %v266, %v485
  %490 = vst [vmem:[%s7] sm:$0xff] %v488
  %491 = vst [vmem:[%s7 + $0x8] sm:$0xff] %v489
  // Predicated region
  $region30: #{cfg_denoiser_forward.1} parent=0 // pred_check
    _
  $region31: #{cfg_denoiser_forward.1} parent=0 // pred_check_branch
    %493 = sbr.rel (0) target = $region33
  $region32: #{cfg_denoiser_forward.1} parent=0 // pred_region
    _
  $region33: #{cfg_denoiser_forward.1} parent=0 // pred_fallthru
    _
  // Predicated region
  $region34: #{cfg_denoiser_forward.1} parent=0 // pred_check
    _
  $region35: #{cfg_denoiser_forward.1} parent=0 // pred_check_branch
    %495 = sbr.rel (0) target = $region37
  $region36: #{cfg_denoiser_forward.1} parent=0 // pred_region
    _
  $region37: #{cfg_denoiser_forward.1} parent=0 // pred_fallthru
    _

</llo_original>
